<compile_context>
chip_gen: v7x
topology: tpu7x:2x2x1
jax: 0.10.0
libtpu: 0.0.40
codegen_flags: <defaults>
</compile_context>

<pallas_src>
import jax
import jax.numpy as jnp
from jax.experimental import pallas as pl
from jax.experimental.pallas import tpu as pltpu


def _center_loss_kernel(lab_ref, x_ref, c_ref, out_ref):
    # lab_ref: (B,) int32 in SMEM (scalar prefetch; consumed by the index_maps).
    # x_ref:   (1, 1, D) f32  feature row of the current sample.
    # c_ref:   (1, 1, D) f32  center row gathered for this sample's label.
    # out_ref: (1, 1, 128) f32 lane-dense per-B-tile partial sum (accumulator).
    del lab_ref
    j = pl.program_id(1)

    @pl.when(j == 0)
    def _():
        out_ref[...] = jnp.zeros_like(out_ref)

    diff = x_ref[...] - c_ref[...]                  # (1, 1, D)
    d = jnp.sum(diff * diff)                        # ||x_b - c_{label_b}||^2
    d = jnp.clip(d, 1e-12, 1.0e12)                  # clamp of the selected entry
    out_ref[...] = out_ref[...] + d                 # splat scalar into all lanes


def center_loss(x, labels, centers, *, loss_weight=1.0, samples_per_tile=8):
    """x: (B, D) f32, labels: (B,) int32, centers: (C, D) f32 -> scalar f32."""
    batch_size, feat_dim = x.shape
    num_classes = centers.shape[0]

    # Reproduce the module's `labels_` remapping:
    #   labels_ = torch.Tensor(B) (uninitialized); for v in labels: labels_[v] = labels[v]
    # TODO(synk): original reads uninitialized memory for untouched slots; we use 0.
    labels_i = labels.astype(jnp.int32)
    labels_remap = jnp.zeros((batch_size,), jnp.int32).at[labels_i].set(
        labels_i[labels_i])

    tb = samples_per_tile
    if batch_size % tb != 0:
        tb = 1  # TODO(synk): pad/mask the tail tile instead of degrading to tb=1.
    num_b_tiles = batch_size // tb

    # (rows, 1, D) layout so every block's trailing two dims equal the full
    # array dims (satisfies the (8, 128) block-shape rule for any D).
    x3 = x.astype(jnp.float32).reshape(batch_size, 1, feat_dim)
    c3 = centers.astype(jnp.float32).reshape(num_classes, 1, feat_dim)

    grid_spec = pltpu.PrefetchScalarGridSpec(
        num_scalar_prefetch=1,
        grid=(num_b_tiles, tb),
        in_specs=[
            # one feature row per grid step
            pl.BlockSpec((1, 1, feat_dim), lambda i, j, lab: (i * tb + j, 0, 0)),
            # label-driven gather of the single needed center row: no (B, C)
            # distmat, no (C, D) centers block resident in VMEM.
            pl.BlockSpec((1, 1, feat_dim), lambda i, j, lab: (lab[i * tb + j], 0, 0)),
        ],
        # Lane-dense per-B-tile partial; same block across j => VMEM-resident
        # accumulator, written back once per B-tile.
        out_specs=pl.BlockSpec((1, 1, 128), lambda i, j, lab: (i, 0, 0)),
    )

    partials = pl.pallas_call(
        _center_loss_kernel,
        grid_spec=grid_spec,
        out_shape=jax.ShapeDtypeStruct((num_b_tiles, 1, 128), jnp.float32),
        compiler_params=pltpu.CompilerParams(
            dimension_semantics=("parallel", "arbitrary")),
        cost_estimate=pl.CostEstimate(
            flops=3 * batch_size * feat_dim,
            transcendentals=0,
            bytes_accessed=(2 * batch_size * feat_dim + num_b_tiles * 128) * 4),
    )(labels_remap, x3, c3)

    total = jnp.sum(partials[:, 0, 0])
    # The module clamps the WHOLE masked matrix, so the B*(C-1) masked-out zeros
    # each contribute clamp(0, 1e-12, 1e12) = 1e-12; add that analytically.
    total = total + jnp.float32(batch_size * (num_classes - 1)) * jnp.float32(1e-12)
    return total / jnp.float32(batch_size) * jnp.float32(loss_weight)


if __name__ == "__main__":
    key = jax.random.PRNGKey(0)
    k_x, k_c, k_l = jax.random.split(key, 3)

    num_classes = 7
    feat_dim = 2
    batch_size = 16
    loss_weight = 1.0

    # deterministic "parameter" init (module: torch.randn(num_classes, feat_dim))
    centers = jax.random.normal(k_c, (num_classes, feat_dim), jnp.float32)
    x = jax.random.normal(k_x, (batch_size, feat_dim), jnp.float32)
    # labels must be valid class ids (< num_classes) AND valid indices into the
    # labels_ buffer (< batch_size), as the original module requires.
    labels = jax.random.randint(k_l, (batch_size,), 0,
                                min(num_classes, batch_size), dtype=jnp.int32)

    loss = center_loss(x, labels, centers, loss_weight=loss_weight)
    jax.block_until_ready(loss)

    # pure-JAX reference reproducing the module's math (expansion-form distmat,
    # whole-matrix clamp, labels_ remap with zero-filled untouched slots).
    lab_remap = jnp.zeros((batch_size,), jnp.int32).at[labels].set(labels[labels])
    distmat = (jnp.sum(x ** 2, 1, keepdims=True)
               + jnp.sum(centers ** 2, 1, keepdims=True).T
               - 2.0 * x @ centers.T)
    mask = (lab_remap[:, None] == jnp.arange(num_classes)[None, :]).astype(jnp.float32)
    ref = jnp.clip(distmat * mask, 1e-12, 1e12).sum() / batch_size * loss_weight

    assert jnp.allclose(loss, ref, rtol=1e-5, atol=1e-5), (loss, ref)
    print("KERNEL_OK")
</pallas_src>

<mosaic_0001>
module attributes {stable_mosaic.version = 11 : i64} {
  func.func @_center_loss_kernel(%arg0: i32, %arg1: i32, %arg2: memref<16xi32, #tpu.memory_space<smem>>, %arg3: memref<1x1x2xf32, #tpu.memory_space<vmem>>, %arg4: memref<1x1x2xf32, #tpu.memory_space<vmem>>, %arg5: memref<1x1x128xf32, #tpu.memory_space<vmem>>) attributes {dimension_semantics = [#tpu.dimension_semantics<parallel>, #tpu.dimension_semantics<arbitrary>], iteration_bounds = array<i64: 2, 8>, scalar_prefetch = 1 : i64, scratch_operands = 0 : i64, tpu.core_type = #tpu.core_type<tc>, window_params = [{transform_indices = @transform_0, window_bounds = array<i64: 1, 1, 2>}, {transform_indices = @transform_1, window_bounds = array<i64: 1, 1, 2>}, {transform_indices = @transform_2, window_bounds = array<i64: 1, 1, 128>}]} {
    %c0_i32 = arith.constant 0 : i32
    %0 = arith.cmpi eq, %arg1, %c0_i32 : i32
    %1 = arith.extui %0 : i1 to i32
    %c0_i32_0 = arith.constant 0 : i32
    %2 = arith.cmpi ne, %1, %c0_i32_0 : i32
    scf.if %2 {
      %cst_14 = arith.constant 0.000000e+00 : f32
      %17 = vector.broadcast %cst_14 : f32 to vector<1x1x128xf32>
      %c0_15 = arith.constant 0 : index
      %c0_16 = arith.constant 0 : index
      %c0_17 = arith.constant 0 : index
      %18 = vector.load %arg5[%c0_15, %c0_16, %c0_17] : memref<1x1x128xf32, #tpu.memory_space<vmem>>, vector<1x1x128xf32>
      tpu.vector_store %arg5[%c0_15, %c0_16, %c0_17], %17 {strides = array<i32>} : memref<1x1x128xf32, #tpu.memory_space<vmem>>, vector<1x1x128xf32>,
    } else {
    }
    %c0 = arith.constant 0 : index
    %c0_1 = arith.constant 0 : index
    %c0_2 = arith.constant 0 : index
    %3 = vector.load %arg3[%c0, %c0_1, %c0_2] : memref<1x1x2xf32, #tpu.memory_space<vmem>>, vector<1x1x2xf32>
    %c0_3 = arith.constant 0 : index
    %c0_4 = arith.constant 0 : index
    %c0_5 = arith.constant 0 : index
    %4 = vector.load %arg4[%c0_3, %c0_4, %c0_5] : memref<1x1x2xf32, #tpu.memory_space<vmem>>, vector<1x1x2xf32>
    %5 = arith.subf %3, %4 : vector<1x1x2xf32>
    %6 = arith.mulf %5, %5 : vector<1x1x2xf32>
    %7 = vector.shape_cast %6 : vector<1x1x2xf32> to vector<1x1x1x2xf32>
    %cst = arith.constant dense<0.000000e+00> : vector<1xf32>
    %8 = vector.multi_reduction <add>, %7, %cst [1, 2, 3] : vector<1x1x1x2xf32> to vector<1xf32>
    %9 = vector.shape_cast %8 : vector<1xf32> to vector<1x1x1x1xf32>
    %10 = vector.extract %9[0, 0, 0, 0] : f32 from vector<1x1x1x1xf32>
    %cst_6 = arith.constant 9.99999996E-13 : f32
    %cst_7 = arith.constant 9.99999995E+11 : f32
    %11 = arith.maximumf %cst_6, %10 : f32
    %12 = arith.minimumf %cst_7, %11 : f32
    %c0_8 = arith.constant 0 : index
    %c0_9 = arith.constant 0 : index
    %c0_10 = arith.constant 0 : index
    %13 = vector.load %arg5[%c0_8, %c0_9, %c0_10] : memref<1x1x128xf32, #tpu.memory_space<vmem>>, vector<1x1x128xf32>
    %14 = vector.broadcast %12 : f32 to vector<1x1x128xf32>
    %15 = arith.addf %13, %14 : vector<1x1x128xf32>
    %c0_11 = arith.constant 0 : index
    %c0_12 = arith.constant 0 : index
    %c0_13 = arith.constant 0 : index
    %16 = vector.load %arg5[%c0_11, %c0_12, %c0_13] : memref<1x1x128xf32, #tpu.memory_space<vmem>>, vector<1x1x128xf32>
    tpu.vector_store %arg5[%c0_11, %c0_12, %c0_13], %15 {strides = array<i32>} : memref<1x1x128xf32, #tpu.memory_space<vmem>>, vector<1x1x128xf32>,
    return
  }
  func.func @transform_0(%arg0: i32, %arg1: i32, %arg2: memref<16xi32, #tpu.memory_space<smem>>) -> (i32, i32, i32) {
    %c8_i32 = arith.constant 8 : i32
    %0 = arith.muli %arg0, %c8_i32 : i32
    %1 = arith.addi %0, %arg1 : i32
    %c0_i32 = arith.constant 0 : i32
    %c0_i32_0 = arith.constant 0 : i32
    %c0_i32_1 = arith.constant 0 : i32
    return %1, %c0_i32, %c0_i32_0 : i32, i32, i32
  }
  func.func @transform_1(%arg0: i32, %arg1: i32, %arg2: memref<16xi32, #tpu.memory_space<smem>>) -> (i32, i32, i32) {
    %c8_i32 = arith.constant 8 : i32
    %0 = arith.muli %arg0, %c8_i32 : i32
    %1 = arith.addi %0, %arg1 : i32
    %2 = arith.index_cast %1 : i32 to index
    %3 = memref.load %arg2[%2] : memref<16xi32, #tpu.memory_space<smem>>
    %c0_i32 = arith.constant 0 : i32
    %c0_i32_0 = arith.constant 0 : i32
    %c0_i32_1 = arith.constant 0 : i32
    return %3, %c0_i32, %c0_i32_0 : i32, i32, i32
  }
  func.func @transform_2(%arg0: i32, %arg1: i32, %arg2: memref<16xi32, #tpu.memory_space<smem>>) -> (i32, i32, i32) {
    %c0_i32 = arith.constant 0 : i32
    %c0_i32_0 = arith.constant 0 : i32
    %c0_i32_1 = arith.constant 0 : i32
    return %arg0, %c0_i32, %c0_i32_0 : i32, i32, i32
  }
}

</mosaic_0001>

<llo_original>
// kernel: tpu_custom_call.1
$region0: #{tpu_custom_call.1}
  #allocation0 [shape = 'u32[]', space=smem, size = 0x4, offset = 0x4, fixed_abs, tag = 'smem constant byte address 0x4 - core index']
  #allocation1 [shape = 'u32[144,128]{1,0:T(1,128)}', space=vmem, size = 0x12000, scoped, tag = 'internal scratch']
  #allocation2 [shape = 's32[1]{0}', space=sflag, size = 0x4, scoped, tag = 'scoped memory for tpu_custom_call.1']
  #allocation3 [shape = 'u8[512]{0}', space=smem, size = 0x200, scoped, tag = 'prefetched SMEM operand 0']
  %s0 = inlined_call_operand.vmem [shape: s32[16], index: 0, kind: input, shape index: {}]
  %s1 = inlined_call_operand.vmem [shape: f32[16,1,2], index: 1, kind: input, shape index: {}]
  %s2 = inlined_call_operand.vmem [shape: f32[7,1,2], index: 2, kind: input, shape index: {}]
  %s3 = inlined_call_operand.hbm [shape: f32[2,1,128], index: 3, kind: output, shape index: {}]
  %s4 = sld [smem:[#allocation0]]
  $region45: #{tpu_custom_call.1} parent=0
    _
  %s6 = ssub.s32 1, %s4
  %s7 = scalar_select 0, %s6, %s4
  %s8 = sshll.u32 %s0, 4
  %s9 = int_to_ptr.vmem [resolvable:$true] %s8
  %11 = dma.vmem_to_smem %s9, 16, [#allocation3], [#allocation2]
  %12 = dma.done [#allocation2], 16
  %13 = sfence
  $region1: #{tpu_custom_call.1} parent=0
    #allocation4 [shape = 'u8[1024]{0}', space=vmem, size = 0x400, scoped, tag = 'output window, operand 0']
    #allocation5 [shape = 's32[2]{0}', space=sflag, size = 0x8, scoped, tag = 'scoped memory for tpu_custom_call.1']
    %14 = vsyncpa [#allocation5], 0
    %s15 = scalar_lea.sflag [#allocation5], 1
    %16 = vsyncpa %s15, 0
    loop: start=0, step=1, limit=18
    $region2: #{tpu_custom_call.1} parent=1 // loop_pre_header
      _
    $region3: #{tpu_custom_call.1} parent=1 // loop_header
      %s18 = sphi 0, %s22
      %p19 = scmp.ge.s32.totalorder %s18, 18
      %s25 = sphi 0, %s37
      %s26 = sphi 0, %s33
      %s27 = sphi 0, %s25
      %s28 = sphi 0, %s26
      %s29 = sphi 0, %s27
      %s30 = sphi 0, %s28
      %s44 = sphi 0, %s46
      %s47 = sphi 0, %s44
      %s48 = sphi 0, %s47
      %s64 = sphi 0, %s48
      %s76 = sphi 0, %s78
      %s79 = sphi 0, %s76
      %s80 = sphi 0, %s79
      %s96 = sphi 0, %s80
      %s102 = sphi 0, %s104
      %s105 = sphi 0, %s102
      %s106 = sphi 0, %s105
      %s122 = sphi 0, %s106
    $region4: #{tpu_custom_call.1} parent=1 // loop_header_branch
      %21 = sbr.rel (%p19) target = $region8
    $region5: #{tpu_custom_call.1} parent=1 // loop_body
      %s23 = ssub.s32 %s18, 1
      %s24 = ssub.s32 %s18, 2
      %s31 = sadd.s32 1, %s26
      %p32 = scmp.ge.s32.totalorder %s31, 8
      %s33 = scalar_select %p32, 0, %s31
      %s34 = sadd.s32 1, %s25
      %s35 = scalar_select %p32, %s34, %s25
      %p36 = scmp.ge.s32.totalorder %s35, 2
      %s37 = scalar_select %p36, 0, %s35
      %s38 = smul.u32 %s25, 8
      %s39 = sadd.s32 %s38, %s26
      %s40 = smul.u32 %s37, 8
      %s41 = sadd.s32 %s40, %s33
      %s42 = ssub.s32 %s39, %s41
      %p43 = scmp.eq.s32.totalorder %s42, 0
      %s45 = sadd.s32 %s44, 1
      %s46 = scalar_select %p43, %s44, %s45
      %p49 = pneg %p43
      %p50 = scmp.eq.s32.totalorder %s18, 15
      %p51 = por %p49, %p50
      %p52 = scmp.ne.s32.totalorder %s44, %s47
      %p53 = scmp.eq.s32.totalorder %s18, 0
      %p54 = por %p52, %p53
      %p55 = scmp.ne.s32.totalorder %s44, %s47
      %p56 = scmp.eq.s32.totalorder %s23, 15
      %p57 = por %p55, %p56
      %p58 = scmp.ne.s32.totalorder %s47, %s48
      %p59 = scmp.eq.s32.totalorder %s23, 0
      %p60 = por %p58, %p59
      %p61 = scmp.ne.s32.totalorder %s47, %s48
      %p62 = scmp.eq.s32.totalorder %s24, 15
      %p63 = por %p61, %p62
      %p65 = scmp.ne.s32.totalorder %s48, %s64
      %p66 = scmp.eq.s32.totalorder %s24, 0
      %p67 = por %p65, %p66
      %s68 = smul.u32 %s25, 8
      %s69 = sadd.s32 %s68, %s26
      %s70 = sld [smem:[#allocation3 + %s69]]
      %s71 = smul.u32 %s37, 8
      %s72 = sadd.s32 %s71, %s33
      %s73 = sld [smem:[#allocation3 + %s72]]
      %s74 = ssub.s32 %s70, %s73
      %p75 = scmp.eq.s32.totalorder %s74, 0
      %s77 = sadd.s32 %s76, 1
      %s78 = scalar_select %p75, %s76, %s77
      %p81 = pneg %p75
      %p82 = scmp.eq.s32.totalorder %s18, 15
      %p83 = por %p81, %p82
      %p84 = scmp.ne.s32.totalorder %s76, %s79
      %p85 = scmp.eq.s32.totalorder %s18, 0
      %p86 = por %p84, %p85
      %p87 = scmp.ne.s32.totalorder %s76, %s79
      %p88 = scmp.eq.s32.totalorder %s23, 15
      %p89 = por %p87, %p88
      %p90 = scmp.ne.s32.totalorder %s79, %s80
      %p91 = scmp.eq.s32.totalorder %s23, 0
      %p92 = por %p90, %p91
      %p93 = scmp.ne.s32.totalorder %s79, %s80
      %p94 = scmp.eq.s32.totalorder %s24, 15
      %p95 = por %p93, %p94
      %p97 = scmp.ne.s32.totalorder %s80, %s96
      %p98 = scmp.eq.s32.totalorder %s24, 0
      %p99 = por %p97, %p98
      %s100 = ssub.s32 %s25, %s37
      %p101 = scmp.eq.s32.totalorder %s100, 0
      %s103 = sadd.s32 %s102, 1
      %s104 = scalar_select %p101, %s102, %s103
      %p107 = pneg %p101
      %p108 = scmp.eq.s32.totalorder %s18, 15
      %p109 = por %p107, %p108
      %p110 = scmp.ne.s32.totalorder %s102, %s105
      %p111 = scmp.eq.s32.totalorder %s18, 0
      %p112 = por %p110, %p111
      %p113 = scmp.ne.s32.totalorder %s102, %s105
      %p114 = scmp.eq.s32.totalorder %s23, 15
      %p115 = por %p113, %p114
      %p116 = scmp.ne.s32.totalorder %s105, %s106
      %p117 = scmp.eq.s32.totalorder %s23, 0
      %p118 = por %p116, %p117
      %p119 = scmp.ne.s32.totalorder %s105, %s106
      %p120 = scmp.eq.s32.totalorder %s24, 15
      %p121 = por %p119, %p120
      %p123 = scmp.ne.s32.totalorder %s106, %s122
      %p124 = scmp.eq.s32.totalorder %s24, 0
      %p125 = por %p123, %p124
      %p126 = scmp.le.s32.totalorder 1, %s18
      %p127 = scmp.lt.s32.totalorder %s18, 17
      %p128 = pnand %p126, %p127
      %p129 = pneg %p128
      // Predicated region
      $region9: #{tpu_custom_call.1} parent=5 // pred_check
        _
      $region10: #{tpu_custom_call.1} parent=5 // pred_check_branch
        %131 = sbr.rel (%p128) target = $region12
      $region11: #{tpu_custom_call.1} parent=5 // pred_region
        %s132 = ssub.s32 %s18, 1
      $region12: #{tpu_custom_call.1} parent=5 // pred_fallthru
        _
      %p133 = scmp.lt.s32.totalorder %s18, 16
      // Predicated region
      $region13: #{tpu_custom_call.1} parent=5 // pred_check
        %p134 = pneg %p133
      $region14: #{tpu_custom_call.1} parent=5 // pred_check_branch
        %136 = sbr.rel (%p134) target = $region16
      $region15: #{tpu_custom_call.1} parent=5 // pred_region
        // Predicated region
        $region17: #{tpu_custom_call.1} parent=15 // pred_check
          %p137 = pneg %p54
        $region18: #{tpu_custom_call.1} parent=15 // pred_check_branch
          %139 = sbr.rel (%p137) target = $region20
        $region19: #{tpu_custom_call.1} parent=15 // pred_region
          %s140 = smul.u32 %s25, 8
          %s141 = sadd.s32 %s140, %s26
          %p142 = scmp.lt.s32.totalorder %s141, 15
          %s143 = scalar_select %p142, %s141, 15
          %s144 = scalar_lea.vmem %s1, %s143
          %s145 = smul.u32 %s25, 8
          %s146 = sadd.s32 %s145, %s26
        $region20: #{tpu_custom_call.1} parent=15 // pred_fallthru
          _
        // Predicated region
        $region21: #{tpu_custom_call.1} parent=15 // pred_check
          %p147 = pneg %p86
        $region22: #{tpu_custom_call.1} parent=15 // pred_check_branch
          %149 = sbr.rel (%p147) target = $region24
        $region23: #{tpu_custom_call.1} parent=15 // pred_region
          %s150 = smul.u32 %s25, 8
          %s151 = sadd.s32 %s150, %s26
          %s152 = sld [smem:[#allocation3 + %s151]]
          %p153 = scmp.lt.s32.totalorder %s152, 6
          %s154 = scalar_select %p153, %s152, 6
          %s155 = scalar_lea.vmem %s2, %s154
          %s156 = smul.u32 %s25, 8
          %s157 = sadd.s32 %s156, %s26
          %s158 = sld [smem:[#allocation3 + %s157]]
        $region24: #{tpu_custom_call.1} parent=15 // pred_fallthru
          _
      $region16: #{tpu_custom_call.1} parent=5 // pred_fallthru
        _
      %p159 = scmp.le.s32.totalorder 1, %s18
      %p160 = scmp.lt.s32.totalorder %s18, 17
      %p161 = pnand %p159, %p160
      %p162 = pneg %p161
      // Predicated region
      $region25: #{tpu_custom_call.1} parent=5 // pred_check
        _
      $region26: #{tpu_custom_call.1} parent=5 // pred_check_branch
        %164 = sbr.rel (%p161) target = $region28
      $region27: #{tpu_custom_call.1} parent=5 // pred_region
        %s165 = ssub.s32 %s18, 1
        %s166 = smul.u32 %s27, 8
        %s167 = sadd.s32 %s166, %s28
        %p168 = scmp.lt.s32.totalorder %s167, 15
        %s169 = scalar_select %p168, %s167, 15
        %s170 = scalar_lea.vmem %s1, %s169
        %p171 = pneg %p60
        %p172 = pneg %p57
        %s173 = smul.u32 %s27, 8
        %s174 = sadd.s32 %s173, %s28
        %s175 = sld [smem:[#allocation3 + %s174]]
        %p176 = scmp.lt.s32.totalorder %s175, 6
        %s177 = scalar_select %p176, %s175, 6
        %s178 = scalar_lea.vmem %s2, %s177
        %p179 = pneg %p92
        %p180 = pneg %p89
        %p181 = pneg %p118
        %p182 = pneg %p115
        %s183 = sand.u32 %s105, 1
        %s184 = scalar_lea.sflag [#allocation5], %s183
        %s185 = sand.u32 %s105, 1
        %s186 = scalar_lea.vmem [#allocation4], %s185
        %s187 = smul.u32 %s27, 8
        %s188 = sadd.s32 %s187, %s28
        %p189 = scmp.lt.s32.totalorder %s188, 15
        %s190 = scalar_select %p189, %s188, 15
        %s191 = scalar_lea.vmem %s1, %s190
        %s192 = smul.u32 %s27, 8
        %s193 = sadd.s32 %s192, %s28
        %s194 = smul.u32 %s27, 8
        %s195 = sadd.s32 %s194, %s28
        %s196 = sld [smem:[#allocation3 + %s195]]
        %p197 = scmp.lt.s32.totalorder %s196, 6
        %s198 = scalar_select %p197, %s196, 6
        %s199 = scalar_lea.vmem %s2, %s198
        %s200 = smul.u32 %s27, 8
        %s201 = sadd.s32 %s200, %s28
        %s202 = sld [smem:[#allocation3 + %s201]]
        %p203 = scmp.eq.s32.totalorder %s28, 0
        // Predicated region
        $region29: #{tpu_custom_call.1} parent=27 // pred_check
          %p204 = pneg %p203
        $region30: #{tpu_custom_call.1} parent=27 // pred_check_branch
          %206 = sbr.rel (%p204) target = $region32
        $region31: #{tpu_custom_call.1} parent=27 // pred_region
          %207 = vst [vmem:[%s186] sm:$0x1] 0.0
        $region32: #{tpu_custom_call.1} parent=27 // pred_fallthru
          _
        %v208 = vld [vmem:[%s191] sm:$0x1]
        %v209 = vld [vmem:[%s199] sm:$0x1]
        %v210 = vsub.f32 %v208, %v209
        %v211 = vmul.f32 %v210, %v210
        %vm212 = vcmask 8192
        %v213 = vsel %vm212, %v211, 0.0
        %214 = vadd.xlane.f32.xlu0 %v213
        %v215 = vpop.xlane.xlu0 %214
        %v216 = vrot.slane %v215, 4
        %v217 = vadd.f32 %v215, %v216
        %v218 = vrot.slane %v217, 2
        %v219 = vadd.f32 %v217, %v218
        %v220 = vrot.slane %v219, 1
        %v221 = vadd.f32 %v219, %v220
        %s222 = vtos %v221
        %s223 = smax.f32 %s222, 1e-12
        %s224 = smin.f32 %s223, 1e+12
        %v225 = vld [vmem:[%s186] sm:$0x1]
        %v226 = vstv %s224
        %v227 = vadd.f32 %v225, %v226
        %228 = vst [vmem:[%s186] sm:$0x1] %v227
        %s229 = sand.u32 %s105, 1
        %s230 = scalar_lea.sflag [#allocation5], %s229
        %s231 = sand.u32 %s105, 1
        %s232 = scalar_lea.vmem [#allocation4], %s231
        // Predicated region
        $region33: #{tpu_custom_call.1} parent=27 // pred_check
          %p233 = pneg %p115
        $region34: #{tpu_custom_call.1} parent=27 // pred_check_branch
          %235 = sbr.rel (%p233) target = $region36
        $region35: #{tpu_custom_call.1} parent=27 // pred_region
          %s237 = ssub.s32 16, 16
          %238 = vsyncadd %s230, %s237
          %s239 = smul.addr %s27, 16
          %s240 = scalar_lea.hbm %s3, %s239
          %s242 = sshll.u32 %s232, 4
          %s243 = int_to_ptr.vmem [resolvable:$true] %s242
          %245 = dma.vmem_to_hbm [thread:$0]  %s243, 16, %s240, %s230
        $region36: #{tpu_custom_call.1} parent=27 // pred_fallthru
          _
      $region28: #{tpu_custom_call.1} parent=5 // pred_fallthru
        _
      %p246 = scmp.le.s32.totalorder 2, %s18
      // Predicated region
      $region37: #{tpu_custom_call.1} parent=5 // pred_check
        %p247 = pneg %p246
      $region38: #{tpu_custom_call.1} parent=5 // pred_check_branch
        %249 = sbr.rel (%p247) target = $region40
      $region39: #{tpu_custom_call.1} parent=5 // pred_region
        %s250 = ssub.s32 %s18, 2
        // Predicated region
        $region41: #{tpu_custom_call.1} parent=39 // pred_check
          %p251 = pneg %p121
        $region42: #{tpu_custom_call.1} parent=39 // pred_check_branch
          %253 = sbr.rel (%p251) target = $region44
        $region43: #{tpu_custom_call.1} parent=39 // pred_region
          %s254 = sand.u32 %s106, 1
          %s255 = scalar_lea.sflag [#allocation5], %s254
          %s256 = sand.u32 %s106, 1
          %s257 = scalar_lea.vmem [#allocation4], %s256
          %258 = dma.done %s255, 16
        $region44: #{tpu_custom_call.1} parent=39 // pred_fallthru
          _
      $region40: #{tpu_custom_call.1} parent=5 // pred_fallthru
        _
    $region6: #{tpu_custom_call.1} parent=1 // loop_footer
      %s22 = sadd.s32 1, %s18
    $region7: #{tpu_custom_call.1} parent=1 // loop_footer_branch
      %17 = sbr.rel target = $region3
    $region8: #{tpu_custom_call.1} parent=1 // loop_exit
      _
    %259 = vsyncpa [#allocation5], 1
    %s260 = scalar_lea.sflag [#allocation5], 1
    %261 = vsyncpa %s260, 1

</llo_original>
